<compile_context>
chip_gen: v7x
topology: tpu7x:2x2x1
jax: 0.10.0
libtpu: 0.0.40
codegen_flags: <defaults>
</compile_context>

<pallas_src>
import math

import jax
import jax.numpy as jnp
from jax.experimental import pallas as pl
from jax.experimental.pallas import tpu as pltpu


def _cdiv(a: int, b: int) -> int:
    return -(-a // b)


def _round_up(a: int, b: int) -> int:
    return _cdiv(a, b) * b


def _fcblock_kernel(xT_ref, w1_ref, b1_ref, w2_ref, b2_ref, o_ref):
    # xT_ref: (Cin_p, TM)  input tile, flattened-batch rows on the LANE axis
    # w1_ref: (Cout, Cin_p), b1_ref: (Cout, 1)   -- resident
    # w2_ref: (Cout, Cout), b2_ref: (Cout, 1)    -- resident
    # o_ref:  (Cout, TM)   lane-dense output tile (full-width vst)
    inv_sqrt2 = jnp.float32(0.7071067811865476)

    xT = xT_ref[...]
    h = jnp.dot(w1_ref[...], xT, preferred_element_type=jnp.float32) + b1_ref[...]
    # exact erf-GELU (matches F.gelu default)
    g = 0.5 * h * (1.0 + jax.lax.erf(h * inv_sqrt2))
    y = jnp.dot(w2_ref[...], g, preferred_element_type=jnp.float32) + b2_ref[...]
    o_ref[...] = y.astype(o_ref.dtype)


def fcblock_forward(x, w1, b1, w2, b2, *, tm_max: int = 16384):
    """FCBlock.forward.

    x:  (..., Cin) float32 (a 1-D x is treated as (N, 1), like the module)
    w1: (Cout, Cin),  b1: (Cout,)   -- nn.Linear(in_channels, out_channels)
    w2: (Cout, Cout), b2: (Cout,)   -- nn.Linear(out_channels, out_channels)
    returns (..., Cout, 1, 1)
    """
    x = jnp.asarray(x, jnp.float32)
    if x.ndim == 1:
        x = x[:, None]                       # x.view(*x.shape, 1)
    lead = x.shape[:-1]
    cin = x.shape[-1]
    cout = w1.shape[0]

    M = math.prod(lead)
    if M == 0:                               # empty leading dims: no kernel launch
        return jnp.zeros(lead + (cout, 1, 1), jnp.float32)

    x2 = x.reshape(M, cin)

    # pad Cin up to a sublane multiple (zero rows are a no-op in the matmul)
    cin_p = max(8, _round_up(cin, 8))

    # ---- lane-dense M tiling: big tiles; even #steps when multi-tile (v7x) --
    M128 = _round_up(M, 128)
    if M128 <= tm_max:
        tm, nt = M128, 1
    else:
        nt = _cdiv(M128, tm_max)
        if nt % 2:
            nt += 1                          # even #grid steps -> both v7x TCs busy
        tm = _round_up(_cdiv(M128, nt), 128)
    Mp = tm * nt

    # single fused pad+copy of the ragged tail (no full zero-buffer + scatter)
    xT = jnp.pad(x2.T, ((0, cin_p - cin), (0, Mp - M)))      # (Cin_p, Mp)

    # separate small resident operands (constant index_map -> DMA'd once)
    w1p = jnp.pad(jnp.asarray(w1, jnp.float32), ((0, 0), (0, cin_p - cin)))
    b1c = jnp.asarray(b1, jnp.float32).reshape(cout, 1)
    w2c = jnp.asarray(w2, jnp.float32)
    b2c = jnp.asarray(b2, jnp.float32).reshape(cout, 1)
    # (optional micro-opt, skipped: b1 could be folded into a spare pad row of
    #  xT / extra column of w1p when cin_p > cin, saving one VPU add per tile.)

    flops = 2 * Mp * cout * (cin_p + cout) + 12 * Mp * cout
    bytes_accessed = 4 * (cin_p * Mp + cout * Mp + cout * (cin_p + cout + 2))
    cost = pl.CostEstimate(flops=flops, transcendentals=Mp * cout,
                           bytes_accessed=bytes_accessed)

    outT = pl.pallas_call(
        _fcblock_kernel,
        out_shape=jax.ShapeDtypeStruct((cout, Mp), jnp.float32),
        grid=(nt,),
        in_specs=[
            pl.BlockSpec((cin_p, tm), lambda i: (0, i)),     # x tile (streamed)
            pl.BlockSpec((cout, cin_p), lambda i: (0, 0)),   # W1 (resident)
            pl.BlockSpec((cout, 1), lambda i: (0, 0)),       # b1 (resident)
            pl.BlockSpec((cout, cout), lambda i: (0, 0)),    # W2 (resident)
            pl.BlockSpec((cout, 1), lambda i: (0, 0)),       # b2 (resident)
        ],
        out_specs=pl.BlockSpec((cout, tm), lambda i: (0, i)),
        compiler_params=pltpu.CompilerParams(
            dimension_semantics=("parallel",)),
        cost_estimate=cost,
    )(xT, w1p, b1c, w2c, b2c)

    # Back to the module's natural layout.  Downstream code that can consume
    # the lane-dense (Cout, M) slab directly should do so to skip this pass.
    out = outT[:, :M].T                       # (M, Cout)
    return out.reshape(lead + (cout, 1, 1))   # x.view(*x.shape, 1, 1)


def reference_forward(x, w1, b1, w2, b2):
    x = jnp.asarray(x, jnp.float32)
    if x.ndim == 1:
        x = x[:, None]
    h = x @ w1.T + b1
    g = 0.5 * h * (1.0 + jax.lax.erf(h * jnp.float32(0.7071067811865476)))
    y = g @ w2.T + b2
    return y.reshape(y.shape + (1, 1))


if __name__ == "__main__":
    key = jax.random.PRNGKey(0)
    k1, k2, k3, k4, k5, k6, k7, k8 = jax.random.split(key, 8)

    IN_CHANNELS, OUT_CHANNELS = 4, 8

    # deterministic synthetic parameters (shapes from nn.Linear)
    w1 = 0.3 * jax.random.normal(k1, (OUT_CHANNELS, IN_CHANNELS), jnp.float32)
    b1 = 0.1 * jax.random.normal(k2, (OUT_CHANNELS,), jnp.float32)
    w2 = 0.3 * jax.random.normal(k3, (OUT_CHANNELS, OUT_CHANNELS), jnp.float32)
    b2 = 0.1 * jax.random.normal(k4, (OUT_CHANNELS,), jnp.float32)

    # case 1: small 2-D input (batch, in_channels) -> single tile
    x_small = jax.random.normal(k5, (2, IN_CHANNELS), jnp.float32)
    out_small = jax.block_until_ready(fcblock_forward(x_small, w1, b1, w2, b2))
    ref_small = reference_forward(x_small, w1, b1, w2, b2)
    assert out_small.shape == (2, OUT_CHANNELS, 1, 1), out_small.shape
    assert jnp.allclose(out_small, ref_small, rtol=1e-4, atol=1e-4), float(
        jnp.max(jnp.abs(out_small - ref_small)))

    # case 2: larger leading dims; run with the default (single big tile) and
    # with a small tm_max to exercise the multi-tile, even-grid + ragged-pad path
    x_big = jax.random.normal(k6, (5, 130, IN_CHANNELS), jnp.float32)
    ref_big = reference_forward(x_big, w1, b1, w2, b2)
    out_big = jax.block_until_ready(fcblock_forward(x_big, w1, b1, w2, b2))
    assert out_big.shape == (5, 130, OUT_CHANNELS, 1, 1), out_big.shape
    assert jnp.allclose(out_big, ref_big, rtol=1e-4, atol=1e-4), float(
        jnp.max(jnp.abs(out_big - ref_big)))
    out_big2 = jax.block_until_ready(
        fcblock_forward(x_big, w1, b1, w2, b2, tm_max=256))  # grid of 4 tiles
    assert out_big2.shape == (5, 130, OUT_CHANNELS, 1, 1), out_big2.shape
    assert jnp.allclose(out_big2, ref_big, rtol=1e-4, atol=1e-4), float(
        jnp.max(jnp.abs(out_big2 - ref_big)))

    # case 3: 1-D input branch (x.view(*x.shape, 1) => in_channels == 1)
    w1_1 = 0.3 * jax.random.normal(k7, (OUT_CHANNELS, 1), jnp.float32)
    b1_1 = 0.1 * jax.random.normal(k8, (OUT_CHANNELS,), jnp.float32)
    x_1d = jnp.linspace(-2.0, 2.0, 9, dtype=jnp.float32)
    out_1d = jax.block_until_ready(fcblock_forward(x_1d, w1_1, b1_1, w2, b2))
    ref_1d = reference_forward(x_1d, w1_1, b1_1, w2, b2)
    assert out_1d.shape == (9, OUT_CHANNELS, 1, 1), out_1d.shape
    assert jnp.allclose(out_1d, ref_1d, rtol=1e-4, atol=1e-4), float(
        jnp.max(jnp.abs(out_1d - ref_1d)))

    print("KERNEL_OK")
</pallas_src>

<mosaic_0001>
module attributes {stable_mosaic.version = 11 : i64} {
  func.func @_fcblock_kernel(%arg0: i32, %arg1: memref<8x128xf32, #tpu.memory_space<vmem>>, %arg2: memref<8x8xf32, #tpu.memory_space<vmem>>, %arg3: memref<8x1xf32, #tpu.memory_space<vmem>>, %arg4: memref<8x8xf32, #tpu.memory_space<vmem>>, %arg5: memref<8x1xf32, #tpu.memory_space<vmem>>, %arg6: memref<8x128xf32, #tpu.memory_space<vmem>>) attributes {dimension_semantics = [#tpu.dimension_semantics<parallel>], iteration_bounds = array<i64: 1>, scalar_prefetch = 0 : i64, scratch_operands = 0 : i64, tpu.core_type = #tpu.core_type<tc>, window_params = [{transform_indices = @transform_0, window_bounds = array<i64: 8, 128>}, {pipeline_mode = #tpu.pipeline_mode<synchronous>, transform_indices = @transform_1, window_bounds = array<i64: 8, 8>}, {pipeline_mode = #tpu.pipeline_mode<synchronous>, transform_indices = @transform_2, window_bounds = array<i64: 8, 1>}, {pipeline_mode = #tpu.pipeline_mode<synchronous>, transform_indices = @transform_3, window_bounds = array<i64: 8, 8>}, {pipeline_mode = #tpu.pipeline_mode<synchronous>, transform_indices = @transform_4, window_bounds = array<i64: 8, 1>}, {transform_indices = @transform_5, window_bounds = array<i64: 8, 128>}]} {
    %c0 = arith.constant 0 : index
    %c0_0 = arith.constant 0 : index
    %0 = vector.load %arg1[%c0, %c0_0] : memref<8x128xf32, #tpu.memory_space<vmem>>, vector<8x128xf32>
    %c0_1 = arith.constant 0 : index
    %c0_2 = arith.constant 0 : index
    %1 = vector.load %arg2[%c0_1, %c0_2] : memref<8x8xf32, #tpu.memory_space<vmem>>, vector<8x8xf32>
    %cst = arith.constant dense<0.000000e+00> : vector<8x128xf32>
    %2 = tpu.matmul %1, %0, %cst {dimension_numbers = #tpu.dot_dimension_numbers<[1], [0], [0], [1], [0, 0, 1, 1], [], []>} : vector<8x8xf32>, vector<8x128xf32>, vector<8x128xf32> -> vector<8x128xf32>
    %c0_3 = arith.constant 0 : index
    %c0_4 = arith.constant 0 : index
    %3 = vector.load %arg3[%c0_3, %c0_4] : memref<8x1xf32, #tpu.memory_space<vmem>>, vector<8x1xf32>
    %4 = vector.broadcast %3 : vector<8x1xf32> to vector<8x128xf32>
    %5 = arith.addf %2, %4 : vector<8x128xf32>
    %cst_5 = arith.constant 5.000000e-01 : f32
    %6 = vector.broadcast %cst_5 : f32 to vector<8x128xf32>
    %7 = arith.mulf %6, %5 : vector<8x128xf32>
    %cst_6 = arith.constant 0.707106769 : f32
    %8 = vector.broadcast %cst_6 : f32 to vector<8x128xf32>
    %9 = arith.mulf %5, %8 : vector<8x128xf32>
    %10 = math.erf %9 : vector<8x128xf32>
    %cst_7 = arith.constant 1.000000e+00 : f32
    %11 = vector.broadcast %cst_7 : f32 to vector<8x128xf32>
    %12 = arith.addf %11, %10 : vector<8x128xf32>
    %13 = arith.mulf %7, %12 : vector<8x128xf32>
    %c0_8 = arith.constant 0 : index
    %c0_9 = arith.constant 0 : index
    %14 = vector.load %arg4[%c0_8, %c0_9] : memref<8x8xf32, #tpu.memory_space<vmem>>, vector<8x8xf32>
    %cst_10 = arith.constant dense<0.000000e+00> : vector<8x128xf32>
    %15 = tpu.matmul %14, %13, %cst_10 {dimension_numbers = #tpu.dot_dimension_numbers<[1], [0], [0], [1], [0, 0, 1, 1], [], []>} : vector<8x8xf32>, vector<8x128xf32>, vector<8x128xf32> -> vector<8x128xf32>
    %c0_11 = arith.constant 0 : index
    %c0_12 = arith.constant 0 : index
    %16 = vector.load %arg5[%c0_11, %c0_12] : memref<8x1xf32, #tpu.memory_space<vmem>>, vector<8x1xf32>
    %17 = vector.broadcast %16 : vector<8x1xf32> to vector<8x128xf32>
    %18 = arith.addf %15, %17 : vector<8x128xf32>
    %c0_13 = arith.constant 0 : index
    %c0_14 = arith.constant 0 : index
    %19 = vector.load %arg6[%c0_13, %c0_14] : memref<8x128xf32, #tpu.memory_space<vmem>>, vector<8x128xf32>
    tpu.vector_store %arg6[%c0_13, %c0_14], %18 {strides = array<i32>} : memref<8x128xf32, #tpu.memory_space<vmem>>, vector<8x128xf32>,
    return
  }
  func.func @transform_0(%arg0: i32) -> (i32, i32) {
    %c0_i32 = arith.constant 0 : i32
    %c0_i32_0 = arith.constant 0 : i32
    return %c0_i32, %arg0 : i32, i32
  }
  func.func @transform_1(%arg0: i32) -> (i32, i32) {
    %c0_i32 = arith.constant 0 : i32
    %c0_i32_0 = arith.constant 0 : i32
    %c0_i32_1 = arith.constant 0 : i32
    return %c0_i32, %c0_i32_0 : i32, i32
  }
  func.func @transform_2(%arg0: i32) -> (i32, i32) {
    %c0_i32 = arith.constant 0 : i32
    %c0_i32_0 = arith.constant 0 : i32
    %c0_i32_1 = arith.constant 0 : i32
    return %c0_i32, %c0_i32_0 : i32, i32
  }
  func.func @transform_3(%arg0: i32) -> (i32, i32) {
    %c0_i32 = arith.constant 0 : i32
    %c0_i32_0 = arith.constant 0 : i32
    %c0_i32_1 = arith.constant 0 : i32
    return %c0_i32, %c0_i32_0 : i32, i32
  }
  func.func @transform_4(%arg0: i32) -> (i32, i32) {
    %c0_i32 = arith.constant 0 : i32
    %c0_i32_0 = arith.constant 0 : i32
    %c0_i32_1 = arith.constant 0 : i32
    return %c0_i32, %c0_i32_0 : i32, i32
  }
  func.func @transform_5(%arg0: i32) -> (i32, i32) {
    %c0_i32 = arith.constant 0 : i32
    %c0_i32_0 = arith.constant 0 : i32
    return %c0_i32, %arg0 : i32, i32
  }
}

</mosaic_0001>

<llo_original>
// kernel: tpu_custom_call.1
$region0: #{tpu_custom_call.1}
  #allocation0 [shape = 'u32[]', space=smem, size = 0x4, offset = 0x4, fixed_abs, tag = 'smem constant byte address 0x4 - core index']
  #allocation1 [shape = 'u32[144,128]{1,0:T(1,128)}', space=vmem, size = 0x12000, scoped, tag = 'internal scratch']
  %s0 = inlined_call_operand.vmem [shape: f32[8,128], index: 0, kind: input, shape index: {}]
  %s1 = inlined_call_operand.vmem [shape: f32[8,8], index: 1, kind: input, shape index: {}]
  %s2 = inlined_call_operand.vmem [shape: f32[8,1], index: 2, kind: input, shape index: {}]
  %s3 = inlined_call_operand.vmem [shape: f32[8,8], index: 3, kind: input, shape index: {}]
  %s4 = inlined_call_operand.vmem [shape: f32[8,1], index: 4, kind: input, shape index: {}]
  %s5 = inlined_call_operand.hbm [shape: f32[8,128], index: 5, kind: output, shape index: {}]
  %s6 = sld [smem:[#allocation0]]
  $region30: #{tpu_custom_call.1} parent=0
    _
  %s8 = ssub.s32 1, %s6
  %s9 = scalar_select 0, %s8, %s6
  $region1: #{tpu_custom_call.1} parent=0
    #allocation2 [shape = 'u8[4096]{0}', space=vmem, size = 0x1000, scoped, tag = 'output window, operand 0, single buffered']
    #allocation3 [shape = 's32[1]{0}', space=sflag, size = 0x4, scoped, tag = 'scoped memory for tpu_custom_call.1']
    %10 = vsyncpa [#allocation3], 0
    // Predicated region
    $region2: #{tpu_custom_call.1} parent=1 // pred_check
      _
    $region3: #{tpu_custom_call.1} parent=1 // pred_check_branch
      %12 = sbr.rel (0) target = $region5
    $region4: #{tpu_custom_call.1} parent=1 // pred_region
      _
    $region5: #{tpu_custom_call.1} parent=1 // pred_fallthru
      _
    // Predicated region
    $region6: #{tpu_custom_call.1} parent=1 // pred_check
      _
    $region7: #{tpu_custom_call.1} parent=1 // pred_check_branch
      %14 = sbr.rel (0) target = $region9
    $region8: #{tpu_custom_call.1} parent=1 // pred_region
      _
    $region9: #{tpu_custom_call.1} parent=1 // pred_fallthru
      _
    // Predicated region
    $region10: #{tpu_custom_call.1} parent=1 // pred_check
      _
    $region11: #{tpu_custom_call.1} parent=1 // pred_check_branch
      %16 = sbr.rel (0) target = $region13
    $region12: #{tpu_custom_call.1} parent=1 // pred_region
      _
    $region13: #{tpu_custom_call.1} parent=1 // pred_fallthru
      _
    // Predicated region
    $region14: #{tpu_custom_call.1} parent=1 // pred_check
      _
    $region15: #{tpu_custom_call.1} parent=1 // pred_check_branch
      %18 = sbr.rel (0) target = $region17
    $region16: #{tpu_custom_call.1} parent=1 // pred_region
      _
    $region17: #{tpu_custom_call.1} parent=1 // pred_fallthru
      _
    // Predicated region
    $region18: #{tpu_custom_call.1} parent=1 // pred_check
      _
    $region19: #{tpu_custom_call.1} parent=1 // pred_check_branch
      %20 = sbr.rel (0) target = $region21
    $region20: #{tpu_custom_call.1} parent=1 // pred_region
      _
    $region21: #{tpu_custom_call.1} parent=1 // pred_fallthru
      _
    %v21 = vld [vmem:[%s0] sm:$0xff]
    %v22 = vld [vmem:[%s1] sm:$0xff]
    %v23 = vld [vmem:[%s2] sm:$0xff]
    %25 = vset.pattern.permute.xlu0 0
    %26 = vperm.xlu0 %25, %v23
    %v27 = vpop.permute.xlu0 %26
    %vm29 = vcmask 64512
    %v31 = vsel %vm29, %v22, 0
    %33 = vmatprep.subr.mxu0 0.0
    %34 = vmatpush1.msra.mxu0 %v21
    %35 = vmatprep.subr.mxu0 0.0
    %36 = vmatpush1.msra.mxu0 0.0
    %37 = vmatprep.subr.mxu0 0.0
    %38 = vmatpush1.msra.mxu0 0.0
    %39 = vmatprep.subr.mxu0 0.0
    %40 = vmatpush1.msra.mxu0 0.0
    %41 = vmatprep.subr.mxu0 0.0
    %42 = vmatpush1.msra.mxu0 0.0
    %43 = vmatprep.subr.mxu0 0.0
    %44 = vmatpush1.msra.mxu0 0.0
    %45 = vmatprep.subr.mxu0 0.0
    %46 = vmatpush1.msra.mxu0 0.0
    %47 = vmatprep.subr.mxu0 0.0
    %48 = vmatpush1.msra.mxu0 0.0
    %49 = vmatprep.subr.mxu0 0.0
    %50 = vmatpush1.msra.mxu0 0.0
    %51 = vmatprep.subr.mxu0 0.0
    %52 = vmatpush1.msra.mxu0 0.0
    %53 = vmatprep.subr.mxu0 0.0
    %54 = vmatpush1.msra.mxu0 0.0
    %55 = vmatprep.subr.mxu0 0.0
    %56 = vmatpush1.msra.mxu0 0.0
    %57 = vmatprep.subr.mxu0 0.0
    %58 = vmatpush1.msra.mxu0 0.0
    %59 = vmatprep.subr.mxu0 0.0
    %60 = vmatpush1.msra.mxu0 0.0
    %61 = vmatprep.subr.mxu0 0.0
    %62 = vmatpush1.msra.mxu0 0.0
    %63 = vmatprep.subr.mxu0 0.0
    %64 = vmatpush1.msra.mxu0 0.0
    %65 = vmatprep.subr.mxu0 0.0
    %66 = vmatpush1.msra.mxu0 0.0
    %67 = vmatprep.subr.mxu0 0.0
    %68 = vmatpush1.msra.mxu0 0.0
    %69 = vmatprep.subr.mxu0 0.0
    %70 = vmatpush1.msra.mxu0 0.0
    %71 = vmatprep.subr.mxu0 0.0
    %72 = vmatpush1.msra.mxu0 0.0
    %73 = vmatprep.subr.mxu0 0.0
    %74 = vmatpush1.msra.mxu0 0.0
    %75 = vmatprep.subr.mxu0 0.0
    %76 = vmatpush1.msra.mxu0 0.0
    %77 = vmatprep.subr.mxu0 0.0
    %78 = vmatpush1.msra.mxu0 0.0
    %79 = vmatprep.subr.mxu0 0.0
    %80 = vmatpush1.msra.mxu0 0.0
    %81 = vmatprep.subr.mxu0 0.0
    %82 = vmatpush1.msra.mxu0 0.0
    %83 = vmatprep.subr.mxu0 0.0
    %84 = vmatpush1.msra.mxu0 0.0
    %85 = vmatprep.subr.mxu0 0.0
    %86 = vmatpush1.msra.mxu0 0.0
    %87 = vmatprep.subr.mxu0 0.0
    %88 = vmatpush1.msra.mxu0 0.0
    %89 = vmatprep.subr.mxu0 0.0
    %90 = vmatpush1.msra.mxu0 0.0
    %91 = vmatprep.subr.mxu0 0.0
    %92 = vmatpush1.msra.mxu0 0.0
    %93 = vmatprep.subr.mxu0 0.0
    %94 = vmatpush1.msra.mxu0 0.0
    %95 = vmatprep.subr.mxu0 0.0
    %96 = vmatpush1.msra.mxu0 0.0
    %97 = vmatprep.mubr.f32.mxu0 0.0
    %98 = vmatmul.mubr.f32.gmra.mrb[0].mxu0 %v31
    %v99 = vpop.f32.mrb[0].mxu0
    %v100 = vadd.f32 %v27, %v99
    %v101 = vpop.f32.mrb[0].mxu0
    %102 = vdwg.mxu0
    %v103 = vmul.f32 %v100, 0.5
    %v104 = vmul.f32 %v100, 0.70710677
    %v105 = verf.f32.pop %v104
    %v106 = vadd.f32 %v105, 1.0
    %v107 = vmul.f32 %v103, %v106
    %v108 = vld [vmem:[%s3] sm:$0xff]
    %v109 = vld [vmem:[%s4] sm:$0xff]
    %111 = vset.pattern.permute.xlu0 0
    %112 = vperm.xlu0 %111, %v109
    %v113 = vpop.permute.xlu0 %112
    %v116 = vsel %vm29, %v108, 0
    %118 = vmatprep.subr.mxu0 0.0
    %119 = vmatpush1.msra.mxu0 %v107
    %120 = vmatprep.subr.mxu0 0.0
    %121 = vmatpush1.msra.mxu0 0.0
    %122 = vmatprep.subr.mxu0 0.0
    %123 = vmatpush1.msra.mxu0 0.0
    %124 = vmatprep.subr.mxu0 0.0
    %125 = vmatpush1.msra.mxu0 0.0
    %126 = vmatprep.subr.mxu0 0.0
    %127 = vmatpush1.msra.mxu0 0.0
    %128 = vmatprep.subr.mxu0 0.0
    %129 = vmatpush1.msra.mxu0 0.0
    %130 = vmatprep.subr.mxu0 0.0
    %131 = vmatpush1.msra.mxu0 0.0
    %132 = vmatprep.subr.mxu0 0.0
    %133 = vmatpush1.msra.mxu0 0.0
    %134 = vmatprep.subr.mxu0 0.0
    %135 = vmatpush1.msra.mxu0 0.0
    %136 = vmatprep.subr.mxu0 0.0
    %137 = vmatpush1.msra.mxu0 0.0
    %138 = vmatprep.subr.mxu0 0.0
    %139 = vmatpush1.msra.mxu0 0.0
    %140 = vmatprep.subr.mxu0 0.0
    %141 = vmatpush1.msra.mxu0 0.0
    %142 = vmatprep.subr.mxu0 0.0
    %143 = vmatpush1.msra.mxu0 0.0
    %144 = vmatprep.subr.mxu0 0.0
    %145 = vmatpush1.msra.mxu0 0.0
    %146 = vmatprep.subr.mxu0 0.0
    %147 = vmatpush1.msra.mxu0 0.0
    %148 = vmatprep.subr.mxu0 0.0
    %149 = vmatpush1.msra.mxu0 0.0
    %150 = vmatprep.subr.mxu0 0.0
    %151 = vmatpush1.msra.mxu0 0.0
    %152 = vmatprep.subr.mxu0 0.0
    %153 = vmatpush1.msra.mxu0 0.0
    %154 = vmatprep.subr.mxu0 0.0
    %155 = vmatpush1.msra.mxu0 0.0
    %156 = vmatprep.subr.mxu0 0.0
    %157 = vmatpush1.msra.mxu0 0.0
    %158 = vmatprep.subr.mxu0 0.0
    %159 = vmatpush1.msra.mxu0 0.0
    %160 = vmatprep.subr.mxu0 0.0
    %161 = vmatpush1.msra.mxu0 0.0
    %162 = vmatprep.subr.mxu0 0.0
    %163 = vmatpush1.msra.mxu0 0.0
    %164 = vmatprep.subr.mxu0 0.0
    %165 = vmatpush1.msra.mxu0 0.0
    %166 = vmatprep.subr.mxu0 0.0
    %167 = vmatpush1.msra.mxu0 0.0
    %168 = vmatprep.subr.mxu0 0.0
    %169 = vmatpush1.msra.mxu0 0.0
    %170 = vmatprep.subr.mxu0 0.0
    %171 = vmatpush1.msra.mxu0 0.0
    %172 = vmatprep.subr.mxu0 0.0
    %173 = vmatpush1.msra.mxu0 0.0
    %174 = vmatprep.subr.mxu0 0.0
    %175 = vmatpush1.msra.mxu0 0.0
    %176 = vmatprep.subr.mxu0 0.0
    %177 = vmatpush1.msra.mxu0 0.0
    %178 = vmatprep.subr.mxu0 0.0
    %179 = vmatpush1.msra.mxu0 0.0
    %180 = vmatprep.subr.mxu0 0.0
    %181 = vmatpush1.msra.mxu0 0.0
    %182 = vmatprep.mubr.f32.mxu0 0.0
    %183 = vmatmul.mubr.f32.gmra.mrb[0].mxu0 %v116
    %v184 = vpop.f32.mrb[0].mxu0
    %v185 = vadd.f32 %v113, %v184
    %v186 = vpop.f32.mrb[0].mxu0
    %187 = vdwg.mxu0
    %188 = vst [vmem:[#allocation2] sm:$0xff] %v185
    // Predicated region
    $region22: #{tpu_custom_call.1} parent=1 // pred_check
      _
    $region23: #{tpu_custom_call.1} parent=1 // pred_check_branch
      %190 = sbr.rel (0) target = $region25
    $region24: #{tpu_custom_call.1} parent=1 // pred_region
      %s192 = ssub.s32 128, 128
      %193 = vsyncadd [#allocation3], %s192
      %s195 = sshll.u32 [#allocation2], 4
      %s196 = int_to_ptr.vmem [resolvable:$true] %s195
      %198 = dma.vmem_to_hbm [thread:$0]  %s196, 128, %s5, [#allocation3]
    $region25: #{tpu_custom_call.1} parent=1 // pred_fallthru
      _
    // Predicated region
    $region26: #{tpu_custom_call.1} parent=1 // pred_check
      _
    $region27: #{tpu_custom_call.1} parent=1 // pred_check_branch
      %200 = sbr.rel (0) target = $region29
    $region28: #{tpu_custom_call.1} parent=1 // pred_region
      %201 = dma.done [#allocation3], 128
    $region29: #{tpu_custom_call.1} parent=1 // pred_fallthru
      _
    %202 = vsyncpa [#allocation3], 1

</llo_original>
